<compile_context>
chip_gen: v6e
topology: v6e:2x2x1
jax: 0.10.0
libtpu: 0.0.40
codegen_flags: <defaults>
</compile_context>

<pallas_src>
import functools

import jax
import jax.numpy as jnp
from jax.experimental import pallas as pl
from jax.experimental.pallas import tpu as pltpu

LANE = 128            # lane width (last dim of a vreg tile)
SUB = 8               # sublane width (second-to-last dim of a vreg tile)
MAX_TR = 2048         # max rows per tile: 2048*128*4B = 1 MiB per block
SMALL_ELEMS = 128 * 1024   # below this, the pure-jnp path wins (fixed costs)
VMEM_LIMIT = 32 << 20      # explicit scoped-VMEM limit, safe on v5e/v6e/v7x


def _irt_kernel(theta_ref, a_ref, b_ref, pred_ref):
    """Elementwise IRT: pred = sigmoid(3.4 * sigmoid(a_raw) * (theta - b)).

    (3.4 == 1.7 * 2; the discrimination scaling is folded into one constant.
    Both sigmoids stay on the EUP; the rest is VPU elementwise.)
    """
    a = jax.nn.sigmoid(a_ref[...])
    pred_ref[...] = jax.nn.sigmoid(3.4 * a * (theta_ref[...] - b_ref[...]))


def _slab_geometry(batch):
    """Rows / tile_rows for a lane+sublane-dense (rows, 128) f32 slab.

    Guarantees: rows % tile_rows == 0, tile_rows % 8 == 0, tile_rows <= MAX_TR,
    and >= 2 grid steps whenever rows >= 16 (dual-TC on v7x, gives the
    software pipeline something to overlap) with minimal padding waste.
    """
    rows = -(-batch // LANE)                                  # ceil(B / 128)
    rows = max(SUB, ((rows + SUB - 1) // SUB) * SUB)          # multiple of 8
    if rows <= SUB:
        return rows, rows                                     # single tile
    n_tiles = max(2, -(-rows // MAX_TR))
    tile_rows = ((-(-rows // n_tiles) + SUB - 1) // SUB) * SUB
    return n_tiles * tile_rows, tile_rows


def _pad_ids(ids, rows):
    """(B,) int -> (rows, 128) int32, zero padded (0 is a valid table index)."""
    b = ids.shape[0]
    return jnp.pad(ids.astype(jnp.int32), (0, rows * LANE - b)).reshape(rows, LANE)


@functools.partial(jax.jit, static_argnames=("with_pair", "use_pallas"))
def irt_forward(theta_emb, a_emb, b_emb, stu_id, exer_id,
                user_id_pair=None, *, with_pair=False, use_pallas=None):
    """JAX/Pallas equivalent of IRTNet.forward.

    theta_emb: (student_n, 1) f32;  a_emb, b_emb: (exer_n, 1) f32
    stu_id, exer_id (, user_id_pair): (B,) int32
    use_pallas: None = auto (Pallas only for large batches), True/False = force.
    """
    B = stu_id.shape[0]
    rows, tile_rows = _slab_geometry(B)
    if use_pallas is None:
        use_pallas = rows * LANE >= SMALL_ELEMS   # static (derived from shapes)

    theta_tbl = theta_emb.reshape(-1).astype(jnp.float32)   # (student_n,)
    a_tbl = a_emb.reshape(-1).astype(jnp.float32)            # (exer_n,)
    b_tbl = b_emb.reshape(-1).astype(jnp.float32)            # (exer_n,)

    if use_pallas:
        # --- glue: pad int32 ids, gather straight into slab shape ----------
        stu_slab = _pad_ids(stu_id, rows)        # (rows, 128) i32
        exer_slab = _pad_ids(exer_id, rows)      # (rows, 128) i32
        th_slab = theta_tbl[stu_slab]            # (rows, 128) f32
        a_slab = a_tbl[exer_slab]                # (rows, 128) f32
        b_slab = b_tbl[exer_slab]                # (rows, 128) f32

        # --- hot path: elementwise IRT in Pallas, batch-tiled + pipelined --
        grid = (rows // tile_rows,)
        block = pl.BlockSpec((tile_rows, LANE), lambda i: (i, 0))
        n_elem = rows * LANE
        pred_slab = pl.pallas_call(
            _irt_kernel,
            out_shape=jax.ShapeDtypeStruct((rows, LANE), jnp.float32),
            grid=grid,
            in_specs=[block, block, block],
            out_specs=block,
            compiler_params=pltpu.CompilerParams(
                dimension_semantics=("parallel",),
                vmem_limit_bytes=VMEM_LIMIT),
            cost_estimate=pl.CostEstimate(
                flops=4 * n_elem,
                transcendentals=2 * n_elem,
                bytes_accessed=4 * n_elem * 4),
        )(th_slab, a_slab, b_slab)

        pred = pred_slab.reshape(-1)[:B]         # matches torch .view(-1)
    else:
        # Small-batch fast path: let XLA fuse gather + sigmoid in one kernel.
        theta_f = theta_tbl[stu_id]
        a_f = jax.nn.sigmoid(a_tbl[exer_id])
        pred = jax.nn.sigmoid(3.4 * a_f * (theta_f - b_tbl[exer_id]))

    if with_pair:
        if user_id_pair is None:
            raise ValueError("with_pair=True requires user_id_pair")
        theta = theta_emb[stu_id]                # (B, 1), as in the reference
        theta_pair = theta_emb[user_id_pair]     # (B, 1)
        return pred, theta, theta_pair
    return pred


def _reference_forward(theta_emb, a_emb, b_emb, stu_id, exer_id, user_id_pair):
    theta = theta_emb[stu_id]
    theta_pair = theta_emb[user_id_pair]
    a = jax.nn.sigmoid(a_emb[exer_id]) * 2.0
    b = b_emb[exer_id]
    pred = jax.nn.sigmoid(1.7 * a * (theta - b)).reshape(-1)
    return pred, theta, theta_pair


if __name__ == "__main__":
    key = jax.random.PRNGKey(0)
    student_n, exer_n, B = 32, 64, 8
    k1, k2, k3, k4, k5, k6 = jax.random.split(key, 6)

    # xavier_normal_ on an (N, 1) weight: std = sqrt(2 / (fan_in + fan_out)).
    theta_emb = jax.random.normal(k1, (student_n, 1), jnp.float32) * (
        2.0 / (1 + student_n)) ** 0.5
    a_emb = jax.random.normal(k2, (exer_n, 1), jnp.float32) * (
        2.0 / (1 + exer_n)) ** 0.5
    b_emb = jax.random.normal(k3, (exer_n, 1), jnp.float32) * (
        2.0 / (1 + exer_n)) ** 0.5

    stu_id = jax.random.randint(k4, (B,), 0, student_n, dtype=jnp.int32)
    exer_id = jax.random.randint(k5, (B,), 0, exer_n, dtype=jnp.int32)
    user_id_pair = jax.random.randint(k6, (B,), 0, student_n, dtype=jnp.int32)

    ref_pred, ref_theta, ref_theta_pair = _reference_forward(
        theta_emb, a_emb, b_emb, stu_id, exer_id, user_id_pair)

    # 1) Pallas path, no user_id_pair -> pred only.
    pred_only = irt_forward(theta_emb, a_emb, b_emb, stu_id, exer_id,
                            use_pallas=True)

    # 2) Pallas path, with user_id_pair -> (pred, theta, theta_pair).
    pred, theta, theta_pair = irt_forward(
        theta_emb, a_emb, b_emb, stu_id, exer_id, user_id_pair,
        with_pair=True, use_pallas=True)

    # 3) Auto path (small batch -> pure-jnp fast path, no pallas_call).
    pred_auto = irt_forward(theta_emb, a_emb, b_emb, stu_id, exer_id)

    jax.block_until_ready((pred_only, pred, theta, theta_pair, pred_auto))

    assert pred.shape == (B,)
    assert theta.shape == (B, 1) and theta_pair.shape == (B, 1)
    assert jnp.allclose(pred_only, ref_pred, atol=1e-6)
    assert jnp.allclose(pred, ref_pred, atol=1e-6)
    assert jnp.allclose(pred_auto, ref_pred, atol=1e-6)
    assert jnp.allclose(theta, ref_theta)
    assert jnp.allclose(theta_pair, ref_theta_pair)

    # 4) Non-lane-aligned batch through Pallas to exercise slab padding.
    B2 = 200
    kk1, kk2 = jax.random.split(k6, 2)
    stu2 = jax.random.randint(kk1, (B2,), 0, student_n, dtype=jnp.int32)
    exr2 = jax.random.randint(kk2, (B2,), 0, exer_n, dtype=jnp.int32)
    pred2 = jax.block_until_ready(
        irt_forward(theta_emb, a_emb, b_emb, stu2, exr2, use_pallas=True))
    ref2, _, _ = _reference_forward(theta_emb, a_emb, b_emb, stu2, exr2, stu2)
    assert pred2.shape == (B2,)
    assert jnp.allclose(pred2, ref2, atol=1e-6)

    print("KERNEL_OK")
</pallas_src>

<mosaic_0001>
module attributes {stable_mosaic.version = 11 : i64} {
  func.func @_irt_kernel(%arg0: i32, %arg1: memref<8x128xf32, #tpu.memory_space<vmem>>, %arg2: memref<8x128xf32, #tpu.memory_space<vmem>>, %arg3: memref<8x128xf32, #tpu.memory_space<vmem>>, %arg4: memref<8x128xf32, #tpu.memory_space<vmem>>) attributes {dimension_semantics = [#tpu.dimension_semantics<parallel>], iteration_bounds = array<i64: 1>, scalar_prefetch = 0 : i64, scratch_operands = 0 : i64, tpu.core_type = #tpu.core_type<tc>, window_params = [{transform_indices = @transform_0, window_bounds = array<i64: 8, 128>}, {transform_indices = @transform_1, window_bounds = array<i64: 8, 128>}, {transform_indices = @transform_2, window_bounds = array<i64: 8, 128>}, {transform_indices = @transform_3, window_bounds = array<i64: 8, 128>}]} {
    %c0 = arith.constant 0 : index
    %c0_0 = arith.constant 0 : index
    %0 = vector.load %arg2[%c0, %c0_0] : memref<8x128xf32, #tpu.memory_space<vmem>>, vector<8x128xf32>
    %1 = arith.negf %0 : vector<8x128xf32>
    %2 = math.exp %1 : vector<8x128xf32>
    %cst = arith.constant 1.000000e+00 : f32
    %3 = vector.broadcast %cst : f32 to vector<8x128xf32>
    %4 = arith.addf %3, %2 : vector<8x128xf32>
    %5 = arith.divf %3, %4 : vector<8x128xf32>
    %cst_1 = arith.constant 3.400000e+00 : f32
    %6 = vector.broadcast %cst_1 : f32 to vector<8x128xf32>
    %7 = arith.mulf %6, %5 : vector<8x128xf32>
    %c0_2 = arith.constant 0 : index
    %c0_3 = arith.constant 0 : index
    %8 = vector.load %arg1[%c0_2, %c0_3] : memref<8x128xf32, #tpu.memory_space<vmem>>, vector<8x128xf32>
    %c0_4 = arith.constant 0 : index
    %c0_5 = arith.constant 0 : index
    %9 = vector.load %arg3[%c0_4, %c0_5] : memref<8x128xf32, #tpu.memory_space<vmem>>, vector<8x128xf32>
    %10 = arith.subf %8, %9 : vector<8x128xf32>
    %11 = arith.mulf %7, %10 : vector<8x128xf32>
    %12 = arith.negf %11 : vector<8x128xf32>
    %13 = math.exp %12 : vector<8x128xf32>
    %cst_6 = arith.constant 1.000000e+00 : f32
    %14 = vector.broadcast %cst_6 : f32 to vector<8x128xf32>
    %15 = arith.addf %14, %13 : vector<8x128xf32>
    %16 = arith.divf %14, %15 : vector<8x128xf32>
    %c0_7 = arith.constant 0 : index
    %c0_8 = arith.constant 0 : index
    %17 = vector.load %arg4[%c0_7, %c0_8] : memref<8x128xf32, #tpu.memory_space<vmem>>, vector<8x128xf32>
    tpu.vector_store %arg4[%c0_7, %c0_8], %16 {strides = array<i32>} : memref<8x128xf32, #tpu.memory_space<vmem>>, vector<8x128xf32>,
    return
  }
  func.func @transform_0(%arg0: i32) -> (i32, i32) {
    %c0_i32 = arith.constant 0 : i32
    %c0_i32_0 = arith.constant 0 : i32
    return %arg0, %c0_i32 : i32, i32
  }
  func.func @transform_1(%arg0: i32) -> (i32, i32) {
    %c0_i32 = arith.constant 0 : i32
    %c0_i32_0 = arith.constant 0 : i32
    return %arg0, %c0_i32 : i32, i32
  }
  func.func @transform_2(%arg0: i32) -> (i32, i32) {
    %c0_i32 = arith.constant 0 : i32
    %c0_i32_0 = arith.constant 0 : i32
    return %arg0, %c0_i32 : i32, i32
  }
  func.func @transform_3(%arg0: i32) -> (i32, i32) {
    %c0_i32 = arith.constant 0 : i32
    %c0_i32_0 = arith.constant 0 : i32
    return %arg0, %c0_i32 : i32, i32
  }
}

</mosaic_0001>

<llo_original>
// kernel: irt_forward.1
$region0: #{irt_forward.1}
  #allocation0 [shape = 'u32[]', space=smem, size = 0x4, offset = 0x4, fixed_abs, tag = 'smem constant byte address 0x4 - core index']
  #allocation1 [shape = 'u32[144,128]{1,0:T(1,128)}', space=vmem, size = 0x12000, scoped, tag = 'internal scratch']
  %s0 = inlined_call_operand.vmem [shape: f32[8,128], index: 0, kind: input, shape index: {}]
  %s1 = inlined_call_operand.vmem [shape: f32[8,128], index: 1, kind: input, shape index: {}]
  %s2 = inlined_call_operand.vmem [shape: f32[8,128], index: 2, kind: input, shape index: {}]
  %s3 = inlined_call_operand.vmem [shape: f32[8,128], index: 3, kind: output, shape index: {}]
  %s4 = sld [smem:[#allocation0]]
  $region22: #{irt_forward.1} parent=0
    _
  %s6 = ssub.s32 1, %s4
  %s7 = scalar_select 0, %s6, %s4
  // Predicated region
  $region2: #{irt_forward.1} parent=0 // pred_check
    _
  $region3: #{irt_forward.1} parent=0 // pred_check_branch
    %9 = sbr.rel (0) target = $region5
  $region4: #{irt_forward.1} parent=0 // pred_region
    _
  $region5: #{irt_forward.1} parent=0 // pred_fallthru
    _
  // Predicated region
  $region6: #{irt_forward.1} parent=0 // pred_check
    _
  $region7: #{irt_forward.1} parent=0 // pred_check_branch
    %11 = sbr.rel (0) target = $region9
  $region8: #{irt_forward.1} parent=0 // pred_region
    _
  $region9: #{irt_forward.1} parent=0 // pred_fallthru
    _
  // Predicated region
  $region10: #{irt_forward.1} parent=0 // pred_check
    _
  $region11: #{irt_forward.1} parent=0 // pred_check_branch
    %13 = sbr.rel (0) target = $region13
  $region12: #{irt_forward.1} parent=0 // pred_region
    _
  $region13: #{irt_forward.1} parent=0 // pred_fallthru
    _
  %v14 = vld [vmem:[%s1] sm:$0xff]
  %v15 = vxor.u32 %v14, 2147483648
  %v16 = vmul.f32 %v15, 1.442695
  %v17 = vpow.pop %v16
  %v18 = vadd.f32 %v17, 1.0
  %v19 = vrcp.pop %v18
  %v20 = vmul.f32 1.0, %v19
  %v21 = vmul.f32 %v20, 3.4
  %v22 = vld [vmem:[%s0] sm:$0xff]
  %v23 = vld [vmem:[%s2] sm:$0xff]
  %v24 = vsub.f32 %v22, %v23
  %v25 = vmul.f32 %v21, %v24
  %v26 = vxor.u32 %v25, 2147483648
  %v27 = vmul.f32 %v26, 1.442695
  %v28 = vpow.pop %v27
  %v29 = vadd.f32 %v28, 1.0
  %v30 = vrcp.pop %v29
  %v31 = vmul.f32 1.0, %v30
  %32 = vst [vmem:[%s3] sm:$0xff] %v31
  // Predicated region
  $region14: #{irt_forward.1} parent=0 // pred_check
    _
  $region15: #{irt_forward.1} parent=0 // pred_check_branch
    %34 = sbr.rel (0) target = $region17
  $region16: #{irt_forward.1} parent=0 // pred_region
    _
  $region17: #{irt_forward.1} parent=0 // pred_fallthru
    _
  // Predicated region
  $region18: #{irt_forward.1} parent=0 // pred_check
    _
  $region19: #{irt_forward.1} parent=0 // pred_check_branch
    %36 = sbr.rel (0) target = $region21
  $region20: #{irt_forward.1} parent=0 // pred_region
    _
  $region21: #{irt_forward.1} parent=0 // pred_fallthru
    _

</llo_original>
